<compile_context>
chip_gen: v7x
topology: tpu7x:2x2x1
jax: 0.10.0
libtpu: 0.0.40
codegen_flags: <defaults>
</compile_context>

<pallas_src>
import functools

import jax
import jax.numpy as jnp
import numpy as np
from jax.experimental import pallas as pl
from jax.experimental.pallas import tpu as pltpu

LANES = 128              # vreg lane width
OUT_LANES = 2 * LANES    # two output features interleaved along lanes


# ---------------------------------------------------------------------------
# Kernel
# ---------------------------------------------------------------------------
def _mlp_kernel(params_ref, x_ref, perm_ref, o_ref):
    # params_ref: (22,) f32 in SMEM:
    #   [0:5] w1 (5,1) | [5:10] b1 (5,) | [10:20] w2 (2,5) row-major | [20:22] b2
    # x_ref:    (bm, 128) f32 or bf16 -- batch elements, lane-dense.
    # perm_ref: (256, 256) bf16 -- constant 0/1 perfect-shuffle matrix.
    # o_ref:    (bm, 256) f32 -- lane 2l = feature 0, lane 2l+1 = feature 1.
    f32 = jnp.float32
    x = x_ref[...]
    pdtype = x.dtype                      # layer-1 compute dtype (f32 or bf16)

    # Hoist all scalar parameter reads (SMEM) out of the unrolled loop.
    w1 = [params_ref[j].astype(pdtype) for j in range(5)]
    b1 = [params_ref[5 + j].astype(pdtype) for j in range(5)]
    w2_0 = [params_ref[10 + j] for j in range(5)]
    w2_1 = [params_ref[15 + j] for j in range(5)]

    acc0 = jnp.full(x.shape, params_ref[20], f32)     # feature-0 accumulator
    acc1 = jnp.full(x.shape, params_ref[21], f32)     # feature-1 accumulator
    for j in range(5):                                # unrolled: 5 hidden units
        h = jnp.tanh(x * w1[j] + b1[j]).astype(f32)   # VPU FMA + EUP tanh
        acc0 = acc0 + h * w2_0[j]
        acc1 = acc1 + h * w2_1[j]

    # Lane-interleave (acc0, acc1) -> (bm, 256) on the idle MXU, exactly:
    # split the f32 values into 3 exact bf16 chunks; each chunk is routed by a
    # 0/1 permutation (products with 1.0 are exact, accumulation is f32).
    cat = jnp.concatenate([acc0, acc1], axis=1)           # (bm, 256) f32
    c0 = cat.astype(jnp.bfloat16)                         # top 8 mantissa bits
    r1 = cat - c0.astype(f32)
    c1 = r1.astype(jnp.bfloat16)                          # next 8 bits
    c2 = (r1 - c1.astype(f32)).astype(jnp.bfloat16)       # last 8 bits
    p = perm_ref[...]
    out = jnp.dot(c0, p, preferred_element_type=f32)
    out = out + jnp.dot(c1, p, preferred_element_type=f32)
    out = out + jnp.dot(c2, p, preferred_element_type=f32)
    o_ref[...] = out


# ---------------------------------------------------------------------------
# Wrapper
# ---------------------------------------------------------------------------
def _make_interleave_matrix_np():
    # P[i, o] = 1 where output lane o takes its value from concat lane i:
    #   even o -> i = o // 2        (feature 0, from acc0's 128 lanes)
    #   odd  o -> i = 128 + o // 2  (feature 1, from acc1's 128 lanes)
    o = np.arange(OUT_LANES)
    src = np.where(o % 2 == 0, o // 2, LANES + o // 2)
    p = np.zeros((OUT_LANES, OUT_LANES), np.float32)
    p[src, o] = 1.0
    return p


_INTERLEAVE_P_NP = _make_interleave_matrix_np()


def _round_up(v, m):
    return -(-v // m) * m


def _row_tiling(rows, max_row_tile, sub):
    """Pick (row tile bm, grid length) for `rows` total rows of 128 lanes."""
    max_row_tile = max(sub, max_row_tile)
    if rows <= min(64, max_row_tile):
        # Tiny batch: dispatch overhead dominates -> single grid step.
        return _round_up(rows, sub), 1
    ntiles = -(-rows // max_row_tile)
    ntiles += ntiles % 2          # even grid -> balanced across v7x's 2 TCs
    bm = _round_up(-(-rows // ntiles), sub)
    grid = -(-rows // bm)
    return bm, grid


@functools.partial(jax.jit, static_argnames=("max_row_tile", "use_bf16_tanh"))
def organism_brain_forward(x, w1, b1, w2, b2, *, max_row_tile=1024,
                           use_bf16_tanh=False):
    """OrganismBrain forward.  x: (B, 1).  Returns (B, 2) in x.dtype."""
    B = x.shape[0]
    params = jnp.concatenate(
        [w1.reshape(-1), b1.reshape(-1), w2.reshape(-1), b2.reshape(-1)]
    ).astype(jnp.float32)                                      # (22,) -> SMEM

    in_dtype = jnp.bfloat16 if use_bf16_tanh else jnp.float32
    sub = 16 if use_bf16_tanh else 8                           # sublane multiple
    x_flat = x.reshape(-1).astype(in_dtype)                    # (B,)

    if B % LANES == 0:
        rows = B // LANES                 # zero-copy in, zero-copy out
    else:
        rows = _round_up(-(-B // LANES), sub)
        x_flat = jnp.pad(x_flat, (0, rows * LANES - B))        # ragged tail only
    x2d = x_flat.reshape(rows, LANES)

    bm, grid = _row_tiling(rows, max_row_tile, sub)
    perm = jnp.asarray(_INTERLEAVE_P_NP, dtype=jnp.bfloat16)   # (256, 256)

    out = pl.pallas_call(
        _mlp_kernel,
        out_shape=jax.ShapeDtypeStruct((rows, OUT_LANES), jnp.float32),
        grid=(grid,),
        in_specs=[
            pl.BlockSpec(memory_space=pltpu.MemorySpace.SMEM),       # 22 params
            pl.BlockSpec((bm, LANES), lambda i: (i, 0)),             # x row tile
            pl.BlockSpec((OUT_LANES, OUT_LANES), lambda i: (0, 0)),  # shuffle mat
        ],
        out_specs=pl.BlockSpec((bm, OUT_LANES), lambda i: (i, 0)),
        compiler_params=pltpu.CompilerParams(
            dimension_semantics=("parallel",),
        ),
    )(params, x2d, perm)

    y = out.reshape(rows * LANES, 2)       # free bitcast: already packed (N, 2)
    if rows * LANES != B:
        y = y[:B]                          # ragged tail only
    return y.astype(x.dtype)


# ---------------------------------------------------------------------------
# Demo / self-check
# ---------------------------------------------------------------------------
def _init_params(key):
    """Mirror PyTorch nn.Linear default init: U(-1/sqrt(fan_in), 1/sqrt(fan_in))."""
    k1, k2, k3, k4 = jax.random.split(key, 4)
    bound1 = 1.0 / np.sqrt(1.0)   # fan_in = 1
    bound2 = 1.0 / np.sqrt(5.0)   # fan_in = 5
    w1 = jax.random.uniform(k1, (5, 1), jnp.float32, -bound1, bound1)
    b1 = jax.random.uniform(k2, (5,), jnp.float32, -bound1, bound1)
    w2 = jax.random.uniform(k3, (2, 5), jnp.float32, -bound2, bound2)
    b2 = jax.random.uniform(k4, (2,), jnp.float32, -bound2, bound2)
    return w1, b1, w2, b2


# TODO(synk): mutate()/crossover() are host-side GA parameter edits, not part of
# forward(); they are intentionally not implemented as kernels.

if __name__ == "__main__":
    key = jax.random.PRNGKey(0)
    k_x, k_p = jax.random.split(key)
    w1, b1, w2, b2 = _init_params(k_p)

    def reference(x):
        return jnp.tanh(x @ w1.T + b1) @ w2.T + b2

    # 1) Ragged batch (B % 128 != 0): pad + tail-slice path, single grid step.
    x_a = jax.random.normal(k_x, (2000, 1), dtype=jnp.float32)
    y_a = jax.block_until_ready(organism_brain_forward(x_a, w1, b1, w2, b2))
    np.testing.assert_allclose(np.asarray(y_a), np.asarray(reference(x_a)),
                               rtol=1e-5, atol=1e-5)

    # 2) Lane-aligned batch (B % 128 == 0): zero-copy in/out; small tile cap to
    #    exercise a multi-step (even) grid on the "parallel" axis.
    x_b = jax.random.normal(jax.random.PRNGKey(1), (2048, 1), dtype=jnp.float32)
    y_b = jax.block_until_ready(
        organism_brain_forward(x_b, w1, b1, w2, b2, max_row_tile=8))
    np.testing.assert_allclose(np.asarray(y_b), np.asarray(reference(x_b)),
                               rtol=1e-5, atol=1e-5)

    # 3) Aligned batch whose row count doesn't divide the tile: masked edge block.
    x_c = jax.random.normal(jax.random.PRNGKey(2), (1280, 1), dtype=jnp.float32)
    y_c = jax.block_until_ready(
        organism_brain_forward(x_c, w1, b1, w2, b2, max_row_tile=8))
    np.testing.assert_allclose(np.asarray(y_c), np.asarray(reference(x_c)),
                               rtol=1e-5, atol=1e-5)

    # 4) Optional bf16 tanh path (v6e/v7x EUP/HBM saver); loose tolerance by design.
    y_d = jax.block_until_ready(
        organism_brain_forward(x_b, w1, b1, w2, b2, use_bf16_tanh=True))
    np.testing.assert_allclose(np.asarray(y_d), np.asarray(reference(x_b)),
                               rtol=0.1, atol=0.1)

    print("KERNEL_OK")
</pallas_src>

<mosaic_0001>
module attributes {stable_mosaic.version = 11 : i64} {
  func.func @_mlp_kernel(%arg0: i32, %arg1: memref<22xf32, #tpu.memory_space<smem>>, %arg2: memref<16x128xf32, #tpu.memory_space<vmem>>, %arg3: memref<256x256xbf16, #tpu.memory_space<vmem>>, %arg4: memref<16x256xf32, #tpu.memory_space<vmem>>) attributes {dimension_semantics = [#tpu.dimension_semantics<parallel>], iteration_bounds = array<i64: 1>, scalar_prefetch = 0 : i64, scratch_operands = 0 : i64, tpu.core_type = #tpu.core_type<tc>, window_params = [{transform_indices = @transform_0, window_bounds = array<i64: 22>}, {transform_indices = @transform_1, window_bounds = array<i64: 16, 128>}, {pipeline_mode = #tpu.pipeline_mode<synchronous>, transform_indices = @transform_2, window_bounds = array<i64: 256, 256>}, {transform_indices = @transform_3, window_bounds = array<i64: 16, 256>}]} {
    %c0 = arith.constant 0 : index
    %c0_0 = arith.constant 0 : index
    %0 = vector.load %arg2[%c0, %c0_0] : memref<16x128xf32, #tpu.memory_space<vmem>>, vector<16x128xf32>
    %c0_1 = arith.constant 0 : index
    %1 = memref.load %arg1[%c0_1] : memref<22xf32, #tpu.memory_space<smem>>
    %c1 = arith.constant 1 : index
    %2 = memref.load %arg1[%c1] : memref<22xf32, #tpu.memory_space<smem>>
    %c2 = arith.constant 2 : index
    %3 = memref.load %arg1[%c2] : memref<22xf32, #tpu.memory_space<smem>>
    %c3 = arith.constant 3 : index
    %4 = memref.load %arg1[%c3] : memref<22xf32, #tpu.memory_space<smem>>
    %c4 = arith.constant 4 : index
    %5 = memref.load %arg1[%c4] : memref<22xf32, #tpu.memory_space<smem>>
    %c5 = arith.constant 5 : index
    %6 = memref.load %arg1[%c5] : memref<22xf32, #tpu.memory_space<smem>>
    %c6 = arith.constant 6 : index
    %7 = memref.load %arg1[%c6] : memref<22xf32, #tpu.memory_space<smem>>
    %c7 = arith.constant 7 : index
    %8 = memref.load %arg1[%c7] : memref<22xf32, #tpu.memory_space<smem>>
    %c8 = arith.constant 8 : index
    %9 = memref.load %arg1[%c8] : memref<22xf32, #tpu.memory_space<smem>>
    %c9 = arith.constant 9 : index
    %10 = memref.load %arg1[%c9] : memref<22xf32, #tpu.memory_space<smem>>
    %c10 = arith.constant 10 : index
    %11 = memref.load %arg1[%c10] : memref<22xf32, #tpu.memory_space<smem>>
    %c11 = arith.constant 11 : index
    %12 = memref.load %arg1[%c11] : memref<22xf32, #tpu.memory_space<smem>>
    %c12 = arith.constant 12 : index
    %13 = memref.load %arg1[%c12] : memref<22xf32, #tpu.memory_space<smem>>
    %c13 = arith.constant 13 : index
    %14 = memref.load %arg1[%c13] : memref<22xf32, #tpu.memory_space<smem>>
    %c14 = arith.constant 14 : index
    %15 = memref.load %arg1[%c14] : memref<22xf32, #tpu.memory_space<smem>>
    %c15 = arith.constant 15 : index
    %16 = memref.load %arg1[%c15] : memref<22xf32, #tpu.memory_space<smem>>
    %c16 = arith.constant 16 : index
    %17 = memref.load %arg1[%c16] : memref<22xf32, #tpu.memory_space<smem>>
    %c17 = arith.constant 17 : index
    %18 = memref.load %arg1[%c17] : memref<22xf32, #tpu.memory_space<smem>>
    %c18 = arith.constant 18 : index
    %19 = memref.load %arg1[%c18] : memref<22xf32, #tpu.memory_space<smem>>
    %c19 = arith.constant 19 : index
    %20 = memref.load %arg1[%c19] : memref<22xf32, #tpu.memory_space<smem>>
    %c20 = arith.constant 20 : index
    %21 = memref.load %arg1[%c20] : memref<22xf32, #tpu.memory_space<smem>>
    %22 = vector.broadcast %21 : f32 to vector<16x128xf32>
    %c21 = arith.constant 21 : index
    %23 = memref.load %arg1[%c21] : memref<22xf32, #tpu.memory_space<smem>>
    %24 = vector.broadcast %23 : f32 to vector<16x128xf32>
    %25 = vector.broadcast %1 : f32 to vector<16x128xf32>
    %26 = arith.mulf %0, %25 : vector<16x128xf32>
    %27 = vector.broadcast %6 : f32 to vector<16x128xf32>
    %28 = arith.addf %26, %27 : vector<16x128xf32>
    %29 = math.tanh %28 : vector<16x128xf32>
    %30 = vector.broadcast %11 : f32 to vector<16x128xf32>
    %31 = arith.mulf %29, %30 : vector<16x128xf32>
    %32 = arith.addf %22, %31 : vector<16x128xf32>
    %33 = vector.broadcast %16 : f32 to vector<16x128xf32>
    %34 = arith.mulf %29, %33 : vector<16x128xf32>
    %35 = arith.addf %24, %34 : vector<16x128xf32>
    %36 = vector.broadcast %2 : f32 to vector<16x128xf32>
    %37 = arith.mulf %0, %36 : vector<16x128xf32>
    %38 = vector.broadcast %7 : f32 to vector<16x128xf32>
    %39 = arith.addf %37, %38 : vector<16x128xf32>
    %40 = math.tanh %39 : vector<16x128xf32>
    %41 = vector.broadcast %12 : f32 to vector<16x128xf32>
    %42 = arith.mulf %40, %41 : vector<16x128xf32>
    %43 = arith.addf %32, %42 : vector<16x128xf32>
    %44 = vector.broadcast %17 : f32 to vector<16x128xf32>
    %45 = arith.mulf %40, %44 : vector<16x128xf32>
    %46 = arith.addf %35, %45 : vector<16x128xf32>
    %47 = vector.broadcast %3 : f32 to vector<16x128xf32>
    %48 = arith.mulf %0, %47 : vector<16x128xf32>
    %49 = vector.broadcast %8 : f32 to vector<16x128xf32>
    %50 = arith.addf %48, %49 : vector<16x128xf32>
    %51 = math.tanh %50 : vector<16x128xf32>
    %52 = vector.broadcast %13 : f32 to vector<16x128xf32>
    %53 = arith.mulf %51, %52 : vector<16x128xf32>
    %54 = arith.addf %43, %53 : vector<16x128xf32>
    %55 = vector.broadcast %18 : f32 to vector<16x128xf32>
    %56 = arith.mulf %51, %55 : vector<16x128xf32>
    %57 = arith.addf %46, %56 : vector<16x128xf32>
    %58 = vector.broadcast %4 : f32 to vector<16x128xf32>
    %59 = arith.mulf %0, %58 : vector<16x128xf32>
    %60 = vector.broadcast %9 : f32 to vector<16x128xf32>
    %61 = arith.addf %59, %60 : vector<16x128xf32>
    %62 = math.tanh %61 : vector<16x128xf32>
    %63 = vector.broadcast %14 : f32 to vector<16x128xf32>
    %64 = arith.mulf %62, %63 : vector<16x128xf32>
    %65 = arith.addf %54, %64 : vector<16x128xf32>
    %66 = vector.broadcast %19 : f32 to vector<16x128xf32>
    %67 = arith.mulf %62, %66 : vector<16x128xf32>
    %68 = arith.addf %57, %67 : vector<16x128xf32>
    %69 = vector.broadcast %5 : f32 to vector<16x128xf32>
    %70 = arith.mulf %0, %69 : vector<16x128xf32>
    %71 = vector.broadcast %10 : f32 to vector<16x128xf32>
    %72 = arith.addf %70, %71 : vector<16x128xf32>
    %73 = math.tanh %72 : vector<16x128xf32>
    %74 = vector.broadcast %15 : f32 to vector<16x128xf32>
    %75 = arith.mulf %73, %74 : vector<16x128xf32>
    %76 = arith.addf %65, %75 : vector<16x128xf32>
    %77 = vector.broadcast %20 : f32 to vector<16x128xf32>
    %78 = arith.mulf %73, %77 : vector<16x128xf32>
    %79 = arith.addf %68, %78 : vector<16x128xf32>
    %80 = tpu.concatenate %76, %79 in 1 : vector<16x128xf32>, vector<16x128xf32> -> vector<16x256xf32>
    %81 = arith.truncf %80 : vector<16x256xf32> to vector<16x256xbf16>
    %82 = arith.extf %81 : vector<16x256xbf16> to vector<16x256xf32>
    %83 = arith.subf %80, %82 : vector<16x256xf32>
    %84 = arith.truncf %83 : vector<16x256xf32> to vector<16x256xbf16>
    %85 = arith.extf %84 : vector<16x256xbf16> to vector<16x256xf32>
    %86 = arith.subf %83, %85 : vector<16x256xf32>
    %87 = arith.truncf %86 : vector<16x256xf32> to vector<16x256xbf16>
    %c0_2 = arith.constant 0 : index
    %c0_3 = arith.constant 0 : index
    %88 = vector.load %arg3[%c0_2, %c0_3] : memref<256x256xbf16, #tpu.memory_space<vmem>>, vector<256x256xbf16>
    %cst = arith.constant dense<0.000000e+00> : vector<16x256xf32>
    %89 = tpu.matmul %81, %88, %cst {dimension_numbers = #tpu.dot_dimension_numbers<[1], [0], [0], [1], [0, 0, 1, 1], [], []>} : vector<16x256xbf16>, vector<256x256xbf16>, vector<16x256xf32> -> vector<16x256xf32>
    %cst_4 = arith.constant dense<0.000000e+00> : vector<16x256xf32>
    %90 = tpu.matmul %84, %88, %cst_4 {dimension_numbers = #tpu.dot_dimension_numbers<[1], [0], [0], [1], [0, 0, 1, 1], [], []>} : vector<16x256xbf16>, vector<256x256xbf16>, vector<16x256xf32> -> vector<16x256xf32>
    %91 = arith.addf %89, %90 : vector<16x256xf32>
    %cst_5 = arith.constant dense<0.000000e+00> : vector<16x256xf32>
    %92 = tpu.matmul %87, %88, %cst_5 {dimension_numbers = #tpu.dot_dimension_numbers<[1], [0], [0], [1], [0, 0, 1, 1], [], []>} : vector<16x256xbf16>, vector<256x256xbf16>, vector<16x256xf32> -> vector<16x256xf32>
    %93 = arith.addf %91, %92 : vector<16x256xf32>
    %c0_6 = arith.constant 0 : index
    %c0_7 = arith.constant 0 : index
    %94 = vector.load %arg4[%c0_6, %c0_7] : memref<16x256xf32, #tpu.memory_space<vmem>>, vector<16x256xf32>
    tpu.vector_store %arg4[%c0_6, %c0_7], %93 {strides = array<i32>} : memref<16x256xf32, #tpu.memory_space<vmem>>, vector<16x256xf32>,
    return
  }
  func.func @transform_0(%arg0: i32) -> i32 {
    %c0_i32 = arith.constant 0 : i32
    %c0_i32_0 = arith.constant 0 : i32
    return %c0_i32 : i32
  }
  func.func @transform_1(%arg0: i32) -> (i32, i32) {
    %c0_i32 = arith.constant 0 : i32
    %c0_i32_0 = arith.constant 0 : i32
    return %arg0, %c0_i32 : i32, i32
  }
  func.func @transform_2(%arg0: i32) -> (i32, i32) {
    %c0_i32 = arith.constant 0 : i32
    %c0_i32_0 = arith.constant 0 : i32
    %c0_i32_1 = arith.constant 0 : i32
    return %c0_i32, %c0_i32_0 : i32, i32
  }
  func.func @transform_3(%arg0: i32) -> (i32, i32) {
    %c0_i32 = arith.constant 0 : i32
    %c0_i32_0 = arith.constant 0 : i32
    return %arg0, %c0_i32 : i32, i32
  }
}

</mosaic_0001>

<llo_original>
// kernel: organism_brain_forward.1
$region0: #{organism_brain_forward.1}
  #allocation0 [shape = 'u32[]', space=smem, size = 0x4, offset = 0x4, fixed_abs, tag = 'smem constant byte address 0x4 - core index']
  #allocation1 [shape = 'u32[144,128]{1,0:T(1,128)}', space=vmem, size = 0x12000, scoped, tag = 'internal scratch']
  %s0 = inlined_call_operand.vmem [shape: f32[22], index: 0, kind: input, shape index: {}]
  %s1 = inlined_call_operand.vmem [shape: f32[16,128], index: 1, kind: input, shape index: {}]
  %s2 = inlined_call_operand.vmem [shape: bf16[256,256], index: 2, kind: input, shape index: {}]
  %s3 = inlined_call_operand.vmem [shape: f32[16,256], index: 3, kind: output, shape index: {}]
  %s4 = sld [smem:[#allocation0]]
  $region26: #{organism_brain_forward.1} parent=0
    _
  %s6 = ssub.s32 1, %s4
  %s7 = scalar_select 0, %s6, %s4
  $region1: #{organism_brain_forward.1} parent=0
    #allocation2 [shape = 'u8[512]{0}', space=smem, size = 0x200, scoped, tag = 'input window, operand 0, single buffered']
    #allocation3 [shape = 's32[1]{0}', space=sflag, size = 0x4, scoped, tag = 'scoped memory for organism_brain_forward.1']
    %8 = vsyncpa [#allocation3], 0
    // Predicated region
    $region2: #{organism_brain_forward.1} parent=1 // pred_check
      _
    $region3: #{organism_brain_forward.1} parent=1 // pred_check_branch
      %10 = sbr.rel (0) target = $region5
    $region4: #{organism_brain_forward.1} parent=1 // pred_region
      %s12 = ssub.s32 16, 16
      %13 = vsyncadd [#allocation3], %s12
      %s15 = sshll.u32 %s0, 4
      %s16 = int_to_ptr.vmem [resolvable:$true] %s15
      %18 = dma.vmem_to_smem %s16, 16, [#allocation2], [#allocation3]
    $region5: #{organism_brain_forward.1} parent=1 // pred_fallthru
      _
    // Predicated region
    $region6: #{organism_brain_forward.1} parent=1 // pred_check
      _
    $region7: #{organism_brain_forward.1} parent=1 // pred_check_branch
      %20 = sbr.rel (0) target = $region9
    $region8: #{organism_brain_forward.1} parent=1 // pred_region
      _
    $region9: #{organism_brain_forward.1} parent=1 // pred_fallthru
      _
    // Predicated region
    $region10: #{organism_brain_forward.1} parent=1 // pred_check
      _
    $region11: #{organism_brain_forward.1} parent=1 // pred_check_branch
      %22 = sbr.rel (0) target = $region13
    $region12: #{organism_brain_forward.1} parent=1 // pred_region
      _
    $region13: #{organism_brain_forward.1} parent=1 // pred_fallthru
      _
    // Predicated region
    $region14: #{organism_brain_forward.1} parent=1 // pred_check
      _
    $region15: #{organism_brain_forward.1} parent=1 // pred_check_branch
      %24 = sbr.rel (0) target = $region17
    $region16: #{organism_brain_forward.1} parent=1 // pred_region
      %25 = dma.done [#allocation3], 16
    $region17: #{organism_brain_forward.1} parent=1 // pred_fallthru
      _
    %26 = sfence
    %v27 = vld [vmem:[%s1] sm:$0xff]
    %v28 = vld [vmem:[%s1 + $0x8] sm:$0xff]
    %s29 = sld [smem:[#allocation2]]
    %s30 = sld [smem:[#allocation2 + $0x1]]
    %s31 = sld [smem:[#allocation2 + $0x2]]
    %s32 = sld [smem:[#allocation2 + $0x3]]
    %s33 = sld [smem:[#allocation2 + $0x4]]
    %s34 = sld [smem:[#allocation2 + $0x5]]
    %s35 = sld [smem:[#allocation2 + $0x6]]
    %s36 = sld [smem:[#allocation2 + $0x7]]
    %s37 = sld [smem:[#allocation2 + $0x8]]
    %s38 = sld [smem:[#allocation2 + $0x9]]
    %s39 = sld [smem:[#allocation2 + $0xa]]
    %s40 = sld [smem:[#allocation2 + $0xb]]
    %s41 = sld [smem:[#allocation2 + $0xc]]
    %s42 = sld [smem:[#allocation2 + $0xd]]
    %s43 = sld [smem:[#allocation2 + $0xe]]
    %s44 = sld [smem:[#allocation2 + $0xf]]
    %s45 = sld [smem:[#allocation2 + $0x10]]
    %s46 = sld [smem:[#allocation2 + $0x11]]
    %s47 = sld [smem:[#allocation2 + $0x12]]
    %s48 = sld [smem:[#allocation2 + $0x13]]
    %s49 = sld [smem:[#allocation2 + $0x14]]
    %v50 = vstv %s49
    %s51 = sld [smem:[#allocation2 + $0x15]]
    %v52 = vstv %s51
    %v53 = vstv %s29
    %v54 = vmul.f32 %v27, %v53
    %v55 = vmul.f32 %v28, %v53
    %v56 = vstv %s34
    %v57 = vadd.f32 %v54, %v56
    %v58 = vadd.f32 %v55, %v56
    %v59 = vtanh.pop %v57
    %v60 = vtanh.pop %v58
    %v61 = vstv %s39
    %v62 = vmul.f32 %v59, %v61
    %v63 = vmul.f32 %v60, %v61
    %v64 = vadd.f32 %v50, %v62
    %v65 = vadd.f32 %v50, %v63
    %v66 = vstv %s44
    %v67 = vmul.f32 %v59, %v66
    %v68 = vmul.f32 %v60, %v66
    %v69 = vadd.f32 %v52, %v67
    %v70 = vadd.f32 %v52, %v68
    %v71 = vstv %s30
    %v72 = vmul.f32 %v27, %v71
    %v73 = vmul.f32 %v28, %v71
    %v74 = vstv %s35
    %v75 = vadd.f32 %v72, %v74
    %v76 = vadd.f32 %v73, %v74
    %v77 = vtanh.pop %v75
    %v78 = vtanh.pop %v76
    %v79 = vstv %s40
    %v80 = vmul.f32 %v77, %v79
    %v81 = vmul.f32 %v78, %v79
    %v82 = vadd.f32 %v64, %v80
    %v83 = vadd.f32 %v65, %v81
    %v84 = vstv %s45
    %v85 = vmul.f32 %v77, %v84
    %v86 = vmul.f32 %v78, %v84
    %v87 = vadd.f32 %v69, %v85
    %v88 = vadd.f32 %v70, %v86
    %v89 = vstv %s31
    %v90 = vmul.f32 %v27, %v89
    %v91 = vmul.f32 %v28, %v89
    %v92 = vstv %s36
    %v93 = vadd.f32 %v90, %v92
    %v94 = vadd.f32 %v91, %v92
    %v95 = vtanh.pop %v93
    %v96 = vtanh.pop %v94
    %v97 = vstv %s41
    %v98 = vmul.f32 %v95, %v97
    %v99 = vmul.f32 %v96, %v97
    %v100 = vadd.f32 %v82, %v98
    %v101 = vadd.f32 %v83, %v99
    %v102 = vstv %s46
    %v103 = vmul.f32 %v95, %v102
    %v104 = vmul.f32 %v96, %v102
    %v105 = vadd.f32 %v87, %v103
    %v106 = vadd.f32 %v88, %v104
    %v107 = vstv %s32
    %v108 = vmul.f32 %v27, %v107
    %v109 = vmul.f32 %v28, %v107
    %v110 = vstv %s37
    %v111 = vadd.f32 %v108, %v110
    %v112 = vadd.f32 %v109, %v110
    %v113 = vtanh.pop %v111
    %v114 = vtanh.pop %v112
    %v115 = vstv %s42
    %v116 = vmul.f32 %v113, %v115
    %v117 = vmul.f32 %v114, %v115
    %v118 = vadd.f32 %v100, %v116
    %v119 = vadd.f32 %v101, %v117
    %v120 = vstv %s47
    %v121 = vmul.f32 %v113, %v120
    %v122 = vmul.f32 %v114, %v120
    %v123 = vadd.f32 %v105, %v121
    %v124 = vadd.f32 %v106, %v122
    %v125 = vstv %s33
    %v126 = vmul.f32 %v27, %v125
    %v127 = vmul.f32 %v28, %v125
    %v128 = vstv %s38
    %v129 = vadd.f32 %v126, %v128
    %v130 = vadd.f32 %v127, %v128
    %v131 = vtanh.pop %v129
    %v132 = vtanh.pop %v130
    %v133 = vstv %s43
    %v134 = vmul.f32 %v131, %v133
    %v135 = vmul.f32 %v132, %v133
    %v136 = vadd.f32 %v118, %v134
    %v137 = vadd.f32 %v119, %v135
    %v138 = vstv %s48
    %v139 = vmul.f32 %v131, %v138
    %v140 = vmul.f32 %v132, %v138
    %v141 = vadd.f32 %v123, %v139
    %v142 = vadd.f32 %v124, %v140
    %v143 = vpack.c.bf16 %v137, %v136
    %v144 = vpack.c.bf16 %v142, %v141
    %v145 = vunpack.c.l.bf16 %v143
    %v146 = vunpack.c.l.bf16 %v144
    %v147 = vunpack.c.h.bf16 %v143
    %v148 = vunpack.c.h.bf16 %v144
    %v149 = vsub.f32 %v136, %v145
    %v150 = vsub.f32 %v141, %v146
    %v151 = vsub.f32 %v137, %v147
    %v152 = vsub.f32 %v142, %v148
    %v153 = vpack.c.bf16 %v151, %v149
    %v154 = vpack.c.bf16 %v152, %v150
    %v155 = vunpack.c.l.bf16 %v153
    %v156 = vunpack.c.l.bf16 %v154
    %v157 = vunpack.c.h.bf16 %v153
    %v158 = vunpack.c.h.bf16 %v154
    %v159 = vsub.f32 %v149, %v155
    %v160 = vsub.f32 %v150, %v156
    %v161 = vsub.f32 %v151, %v157
    %v162 = vsub.f32 %v152, %v158
    %v163 = vpack.c.bf16 %v161, %v159
    %v164 = vpack.c.bf16 %v162, %v160
    %v165 = vld [vmem:[%s2] sm:$0xff]
    %v166 = vld [vmem:[%s2 + $0x8] sm:$0xff]
    %v167 = vld [vmem:[%s2 + $0x10] sm:$0xff]
    %v168 = vld [vmem:[%s2 + $0x18] sm:$0xff]
    %v169 = vld [vmem:[%s2 + $0x20] sm:$0xff]
    %v170 = vld [vmem:[%s2 + $0x28] sm:$0xff]
    %v171 = vld [vmem:[%s2 + $0x30] sm:$0xff]
    %v172 = vld [vmem:[%s2 + $0x38] sm:$0xff]
    %v173 = vld [vmem:[%s2 + $0x40] sm:$0xff]
    %v174 = vld [vmem:[%s2 + $0x48] sm:$0xff]
    %v175 = vld [vmem:[%s2 + $0x50] sm:$0xff]
    %v176 = vld [vmem:[%s2 + $0x58] sm:$0xff]
    %v177 = vld [vmem:[%s2 + $0x60] sm:$0xff]
    %v178 = vld [vmem:[%s2 + $0x68] sm:$0xff]
    %v179 = vld [vmem:[%s2 + $0x70] sm:$0xff]
    %v180 = vld [vmem:[%s2 + $0x78] sm:$0xff]
    %v181 = vld [vmem:[%s2 + $0x80] sm:$0xff]
    %v182 = vld [vmem:[%s2 + $0x88] sm:$0xff]
    %v183 = vld [vmem:[%s2 + $0x90] sm:$0xff]
    %v184 = vld [vmem:[%s2 + $0x98] sm:$0xff]
    %v185 = vld [vmem:[%s2 + $0xa0] sm:$0xff]
    %v186 = vld [vmem:[%s2 + $0xa8] sm:$0xff]
    %v187 = vld [vmem:[%s2 + $0xb0] sm:$0xff]
    %v188 = vld [vmem:[%s2 + $0xb8] sm:$0xff]
    %v189 = vld [vmem:[%s2 + $0xc0] sm:$0xff]
    %v190 = vld [vmem:[%s2 + $0xc8] sm:$0xff]
    %v191 = vld [vmem:[%s2 + $0xd0] sm:$0xff]
    %v192 = vld [vmem:[%s2 + $0xd8] sm:$0xff]
    %v193 = vld [vmem:[%s2 + $0xe0] sm:$0xff]
    %v194 = vld [vmem:[%s2 + $0xe8] sm:$0xff]
    %v195 = vld [vmem:[%s2 + $0xf0] sm:$0xff]
    %v196 = vld [vmem:[%s2 + $0xf8] sm:$0xff]
    %v229 = vunpack.c.l.b16 %v165
    %v230 = vunpack.c.h.b16 %v165
    %v231 = vunpack.c.l.b16 %v166
    %v232 = vunpack.c.h.b16 %v166
    %v233 = vunpack.c.l.b16 %v167
    %v234 = vunpack.c.h.b16 %v167
    %v235 = vunpack.c.l.b16 %v168
    %v236 = vunpack.c.h.b16 %v168
    %v237 = vunpack.c.l.b16 %v169
    %v238 = vunpack.c.h.b16 %v169
    %v239 = vunpack.c.l.b16 %v170
    %v240 = vunpack.c.h.b16 %v170
    %v241 = vunpack.c.l.b16 %v171
    %v242 = vunpack.c.h.b16 %v171
    %v243 = vunpack.c.l.b16 %v172
    %v244 = vunpack.c.h.b16 %v172
    %v245 = vunpack.c.l.b16 %v173
    %v246 = vunpack.c.h.b16 %v173
    %v247 = vunpack.c.l.b16 %v174
    %v248 = vunpack.c.h.b16 %v174
    %v249 = vunpack.c.l.b16 %v175
    %v250 = vunpack.c.h.b16 %v175
    %v251 = vunpack.c.l.b16 %v176
    %v252 = vunpack.c.h.b16 %v176
    %v253 = vunpack.c.l.b16 %v177
    %v254 = vunpack.c.h.b16 %v177
    %v255 = vunpack.c.l.b16 %v178
    %v256 = vunpack.c.h.b16 %v178
    %v257 = vunpack.c.l.b16 %v179
    %v258 = vunpack.c.h.b16 %v179
    %v259 = vunpack.c.l.b16 %v180
    %v260 = vunpack.c.h.b16 %v180
    %v261 = vunpack.c.l.b16 %v181
    %v262 = vunpack.c.h.b16 %v181
    %v263 = vunpack.c.l.b16 %v182
    %v264 = vunpack.c.h.b16 %v182
    %v265 = vunpack.c.l.b16 %v183
    %v266 = vunpack.c.h.b16 %v183
    %v267 = vunpack.c.l.b16 %v184
    %v268 = vunpack.c.h.b16 %v184
    %v269 = vunpack.c.l.b16 %v185
    %v270 = vunpack.c.h.b16 %v185
    %v271 = vunpack.c.l.b16 %v186
    %v272 = vunpack.c.h.b16 %v186
    %v273 = vunpack.c.l.b16 %v187
    %v274 = vunpack.c.h.b16 %v187
    %v275 = vunpack.c.l.b16 %v188
    %v276 = vunpack.c.h.b16 %v188
    %v277 = vunpack.c.l.b16 %v189
    %v278 = vunpack.c.h.b16 %v189
    %v279 = vunpack.c.l.b16 %v190
    %v280 = vunpack.c.h.b16 %v190
    %v281 = vunpack.c.l.b16 %v191
    %v282 = vunpack.c.h.b16 %v191
    %v283 = vunpack.c.l.b16 %v192
    %v284 = vunpack.c.h.b16 %v192
    %v285 = vunpack.c.l.b16 %v193
    %v286 = vunpack.c.h.b16 %v193
    %v287 = vunpack.c.l.b16 %v194
    %v288 = vunpack.c.h.b16 %v194
    %v289 = vunpack.c.l.b16 %v195
    %v290 = vunpack.c.h.b16 %v195
    %v291 = vunpack.c.l.b16 %v196
    %v292 = vunpack.c.h.b16 %v196
    %v293 = vpack.c.b16 %v231, %v229
    %v294 = vpack.c.b16 %v232, %v230
    %v295 = vpack.c.b16 %v235, %v233
    %v296 = vpack.c.b16 %v236, %v234
    %v297 = vpack.c.b16 %v239, %v237
    %v298 = vpack.c.b16 %v240, %v238
    %v299 = vpack.c.b16 %v243, %v241
    %v300 = vpack.c.b16 %v244, %v242
    %v301 = vpack.c.b16 %v247, %v245
    %v302 = vpack.c.b16 %v248, %v246
    %v303 = vpack.c.b16 %v251, %v249
    %v304 = vpack.c.b16 %v252, %v250
    %v305 = vpack.c.b16 %v255, %v253
    %v306 = vpack.c.b16 %v256, %v254
    %v307 = vpack.c.b16 %v259, %v257
    %v308 = vpack.c.b16 %v260, %v258
    %v309 = vpack.c.b16 %v263, %v261
    %v310 = vpack.c.b16 %v264, %v262
    %v311 = vpack.c.b16 %v267, %v265
    %v312 = vpack.c.b16 %v268, %v266
    %v313 = vpack.c.b16 %v271, %v269
    %v314 = vpack.c.b16 %v272, %v270
    %v315 = vpack.c.b16 %v275, %v273
    %v316 = vpack.c.b16 %v276, %v274
    %v317 = vpack.c.b16 %v279, %v277
    %v318 = vpack.c.b16 %v280, %v278
    %v319 = vpack.c.b16 %v283, %v281
    %v320 = vpack.c.b16 %v284, %v282
    %v321 = vpack.c.b16 %v287, %v285
    %v322 = vpack.c.b16 %v288, %v286
    %v323 = vpack.c.b16 %v291, %v289
    %v324 = vpack.c.b16 %v292, %v290
    %357 = vmatprep.subr.bf16.mxu0 %v294
    %358 = vmatpush1.bf16.msra.mxu0 %v293
    %359 = vmatprep.subr.bf16.mxu0 %v296
    %360 = vmatpush1.bf16.msra.mxu0 %v295
    %361 = vmatprep.subr.bf16.mxu0 %v298
    %362 = vmatpush1.bf16.msra.mxu0 %v297
    %363 = vmatprep.subr.bf16.mxu0 %v300
    %364 = vmatpush1.bf16.msra.mxu0 %v299
    %365 = vmatprep.subr.bf16.mxu0 %v302
    %366 = vmatpush1.bf16.msra.mxu0 %v301
    %367 = vmatprep.subr.bf16.mxu0 %v304
    %368 = vmatpush1.bf16.msra.mxu0 %v303
    %369 = vmatprep.subr.bf16.mxu0 %v306
    %370 = vmatpush1.bf16.msra.mxu0 %v305
    %371 = vmatprep.subr.bf16.mxu0 %v308
    %372 = vmatpush1.bf16.msra.mxu0 %v307
    %373 = vmatprep.subr.bf16.mxu0 %v310
    %374 = vmatpush1.bf16.msra.mxu0 %v309
    %375 = vmatprep.subr.bf16.mxu0 %v312
    %376 = vmatpush1.bf16.msra.mxu0 %v311
    %377 = vmatprep.subr.bf16.mxu0 %v314
    %378 = vmatpush1.bf16.msra.mxu0 %v313
    %379 = vmatprep.subr.bf16.mxu0 %v316
    %380 = vmatpush1.bf16.msra.mxu0 %v315
    %381 = vmatprep.subr.bf16.mxu0 %v318
    %382 = vmatpush1.bf16.msra.mxu0 %v317
    %383 = vmatprep.subr.bf16.mxu0 %v320
    %384 = vmatpush1.bf16.msra.mxu0 %v319
    %385 = vmatprep.subr.bf16.mxu0 %v322
    %386 = vmatpush1.bf16.msra.mxu0 %v321
    %387 = vmatprep.subr.bf16.mxu0 %v324
    %388 = vmatpush1.bf16.msra.mxu0 %v323
    %389 = vmatprep.mubr.bf16.mxu0 %v154
    %390 = vmatmul.mubr.bf16.gmra.mrb[0].mxu0 %v153
    %v391 = vpop.f32.mrb[0].mxu0
    %v392 = vadd.f32 0.0, %v391
    %v393 = vpop.f32.mrb[0].mxu0
    %v394 = vadd.f32 0.0, %v393
    %v395 = vpop.f32.mrb[0].mxu0
    %v396 = vadd.f32 0.0, %v395
    %v397 = vpop.f32.mrb[0].mxu0
    %v398 = vadd.f32 0.0, %v397
    %399 = vdwg.mxu0
    %400 = vmatprep.subr.bf16.mxu0 %v294
    %401 = vmatpush1.bf16.msra.mxu0 %v293
    %402 = vmatprep.subr.bf16.mxu0 %v296
    %403 = vmatpush1.bf16.msra.mxu0 %v295
    %404 = vmatprep.subr.bf16.mxu0 %v298
    %405 = vmatpush1.bf16.msra.mxu0 %v297
    %406 = vmatprep.subr.bf16.mxu0 %v300
    %407 = vmatpush1.bf16.msra.mxu0 %v299
    %408 = vmatprep.subr.bf16.mxu0 %v302
    %409 = vmatpush1.bf16.msra.mxu0 %v301
    %410 = vmatprep.subr.bf16.mxu0 %v304
    %411 = vmatpush1.bf16.msra.mxu0 %v303
    %412 = vmatprep.subr.bf16.mxu0 %v306
    %413 = vmatpush1.bf16.msra.mxu0 %v305
    %414 = vmatprep.subr.bf16.mxu0 %v308
    %415 = vmatpush1.bf16.msra.mxu0 %v307
    %416 = vmatprep.subr.bf16.mxu0 %v310
    %417 = vmatpush1.bf16.msra.mxu0 %v309
    %418 = vmatprep.subr.bf16.mxu0 %v312
    %419 = vmatpush1.bf16.msra.mxu0 %v311
    %420 = vmatprep.subr.bf16.mxu0 %v314
    %421 = vmatpush1.bf16.msra.mxu0 %v313
    %422 = vmatprep.subr.bf16.mxu0 %v316
    %423 = vmatpush1.bf16.msra.mxu0 %v315
    %424 = vmatprep.subr.bf16.mxu0 %v318
    %425 = vmatpush1.bf16.msra.mxu0 %v317
    %426 = vmatprep.subr.bf16.mxu0 %v320
    %427 = vmatpush1.bf16.msra.mxu0 %v319
    %428 = vmatprep.subr.bf16.mxu0 %v322
    %429 = vmatpush1.bf16.msra.mxu0 %v321
    %430 = vmatprep.subr.bf16.mxu0 %v324
    %431 = vmatpush1.bf16.msra.mxu0 %v323
    %432 = vmatprep.mubr.bf16.mxu0 %v144
    %433 = vmatmul.mubr.bf16.gmra.mrb[0].mxu0 %v143
    %v434 = vpop.f32.mrb[0].mxu0
    %v435 = vadd.f32 %v392, %v434
    %v436 = vpop.f32.mrb[0].mxu0
    %v437 = vadd.f32 %v394, %v436
    %v438 = vpop.f32.mrb[0].mxu0
    %v439 = vadd.f32 %v396, %v438
    %v440 = vpop.f32.mrb[0].mxu0
    %v441 = vadd.f32 %v398, %v440
    %442 = vdwg.mxu0
    %443 = vmatprep.subr.bf16.mxu0 %v294
    %444 = vmatpush1.bf16.msra.mxu0 %v293
    %445 = vmatprep.subr.bf16.mxu0 %v296
    %446 = vmatpush1.bf16.msra.mxu0 %v295
    %447 = vmatprep.subr.bf16.mxu0 %v298
    %448 = vmatpush1.bf16.msra.mxu0 %v297
    %449 = vmatprep.subr.bf16.mxu0 %v300
    %450 = vmatpush1.bf16.msra.mxu0 %v299
    %451 = vmatprep.subr.bf16.mxu0 %v302
    %452 = vmatpush1.bf16.msra.mxu0 %v301
    %453 = vmatprep.subr.bf16.mxu0 %v304
    %454 = vmatpush1.bf16.msra.mxu0 %v303
    %455 = vmatprep.subr.bf16.mxu0 %v306
    %456 = vmatpush1.bf16.msra.mxu0 %v305
    %457 = vmatprep.subr.bf16.mxu0 %v308
    %458 = vmatpush1.bf16.msra.mxu0 %v307
    %459 = vmatprep.subr.bf16.mxu0 %v310
    %460 = vmatpush1.bf16.msra.mxu0 %v309
    %461 = vmatprep.subr.bf16.mxu0 %v312
    %462 = vmatpush1.bf16.msra.mxu0 %v311
    %463 = vmatprep.subr.bf16.mxu0 %v314
    %464 = vmatpush1.bf16.msra.mxu0 %v313
    %465 = vmatprep.subr.bf16.mxu0 %v316
    %466 = vmatpush1.bf16.msra.mxu0 %v315
    %467 = vmatprep.subr.bf16.mxu0 %v318
    %468 = vmatpush1.bf16.msra.mxu0 %v317
    %469 = vmatprep.subr.bf16.mxu0 %v320
    %470 = vmatpush1.bf16.msra.mxu0 %v319
    %471 = vmatprep.subr.bf16.mxu0 %v322
    %472 = vmatpush1.bf16.msra.mxu0 %v321
    %473 = vmatprep.subr.bf16.mxu0 %v324
    %474 = vmatpush1.bf16.msra.mxu0 %v323
    %475 = vmatprep.mubr.bf16.mxu0 %v164
    %476 = vmatmul.mubr.bf16.gmra.mrb[0].mxu0 %v163
    %v477 = vpop.f32.mrb[0].mxu0
    %v478 = vadd.f32 0.0, %v477
    %v479 = vpop.f32.mrb[0].mxu0
    %v480 = vadd.f32 0.0, %v479
    %v481 = vpop.f32.mrb[0].mxu0
    %v482 = vadd.f32 0.0, %v481
    %v483 = vpop.f32.mrb[0].mxu0
    %v484 = vadd.f32 0.0, %v483
    %485 = vdwg.mxu0
    %v486 = vadd.f32 %v435, %v478
    %v487 = vadd.f32 %v437, %v480
    %v488 = vadd.f32 %v439, %v482
    %v489 = vadd.f32 %v441, %v484
    %490 = vst [vmem:[%s3] sm:$0xff] %v486
    %491 = vst [vmem:[%s3 + $0x8] sm:$0xff] %v487
    %492 = vst [vmem:[%s3 + $0x10] sm:$0xff] %v488
    %493 = vst [vmem:[%s3 + $0x18] sm:$0xff] %v489
    // Predicated region
    $region18: #{organism_brain_forward.1} parent=1 // pred_check
      _
    $region19: #{organism_brain_forward.1} parent=1 // pred_check_branch
      %495 = sbr.rel (0) target = $region21
    $region20: #{organism_brain_forward.1} parent=1 // pred_region
      _
    $region21: #{organism_brain_forward.1} parent=1 // pred_fallthru
      _
    // Predicated region
    $region22: #{organism_brain_forward.1} parent=1 // pred_check
      _
    $region23: #{organism_brain_forward.1} parent=1 // pred_check_branch
      %497 = sbr.rel (0) target = $region25
    $region24: #{organism_brain_forward.1} parent=1 // pred_region
      _
    $region25: #{organism_brain_forward.1} parent=1 // pred_fallthru
      _
    %498 = vsyncpa [#allocation3], 1

</llo_original>
